<compile_context>
chip_gen: v6e
topology: v6e:2x2x1
jax: 0.10.0
libtpu: 0.0.40
codegen_flags: <defaults>
</compile_context>

<pallas_src>
import functools

import jax
import jax.numpy as jnp
from jax.experimental import pallas as pl
from jax.experimental.pallas import tpu as pltpu

_KH = 3
_KW = 3


def _round_up(x, m):
    return ((x + m - 1) // m) * m


# ---------------------------------------------------------------------------
# Fused kernel: 3x3 conv (pad=1) + bias + ReLU + global-avg-pool + Linear,
# Nb batch elements per grid step (single step for small N).
# ---------------------------------------------------------------------------
def _msnet_classifier_kernel(xr_ref, wmat_ref, bpack_ref, wpl_ref, lb_ref,
                             f_ref, logits_ref, *, inv_hw):
    # xr_ref    : (Nb, H, Kpad)        bf16  kh-folded, lane-padded im2col rows
    # wmat_ref  : (Kpad, W*Cout)       bf16  banded conv weights (all kh/kw taps folded)
    # bpack_ref : (1, W*Cout)          f32   conv bias tiled over W
    # wpl_ref   : (W*Cout, Cpad)       bf16  fused (sum over W + linear) weights, lane-padded
    # lb_ref    : (1, Cpad)            f32   linear bias, lane-padded
    # f_ref     : (Nb, H, W*Cout)      bf16  conv+ReLU feature map (lane-dense)
    # logits_ref: (Nb, 1, Cpad)        f32
    Nb, H, Kpad = xr_ref.shape
    WCout = f_ref.shape[2]

    # Single MXU pass for the whole 3x3 conv of Nb images: M = Nb*H, K = Kpad, N = W*Cout.
    x2 = xr_ref[...].reshape(Nb * H, Kpad)                       # bf16, lane-dense
    acc = jnp.dot(x2, wmat_ref[...], preferred_element_type=jnp.float32)
    acc = jnp.maximum(acc + bpack_ref[...], 0.0)                 # bias + ReLU (f32)

    acc3 = acc.reshape(Nb, H, WCout)
    f_ref[...] = acc3.astype(jnp.bfloat16)                       # lane-dense bf16 store

    # Fused global-average-pool + Linear epilogue while acc is still in vregs:
    # sum over H (sublane reduce), scale by 1/(H*W) in f32 BEFORE the bf16 cast,
    # then one small dot that folds the sum over W with the linear layer.
    pooled = jnp.sum(acc3, axis=1) * inv_hw                      # (Nb, W*Cout) f32
    logits = jnp.dot(pooled.astype(jnp.bfloat16), wpl_ref[...],
                     preferred_element_type=jnp.float32) + lb_ref[...]
    logits_ref[...] = logits.reshape(logits_ref.shape)


# ---------------------------------------------------------------------------
# One-time parameter repacking (hoisted out of the forward; call per weight update).
# ---------------------------------------------------------------------------
def pack_classifier_params(conv_w, conv_b, lin_w, lin_b, W):
    """PyTorch-layout weights -> packed kernel operands.

    conv_w : (3, 3, Cin, Cout) HWIO      conv_b : (Cout,)
    lin_w  : (num_classes, Cout)         lin_b  : (num_classes,)

    wmat[kh*(W+2)*Cin + (w+kw)*Cin + ci, w*Cout + co] = conv_w[kh, kw, ci, co]
    so (Nb*H, Kpad) @ (Kpad, W*Cout) performs every kh/kw tap + channel mixing in one
    lane-dense matmul. wpl folds the sum-over-W of the pooled features into the linear
    layer (the 1/(H*W) scale is applied in-kernel in f32 for precision).
    """
    KH, KW, Cin, Cout = conv_w.shape
    num_classes = lin_w.shape[0]
    Kc = KH * (W + KW - 1) * Cin
    Kpad = _round_up(Kc, 128)
    Cpad = _round_up(num_classes, 128)

    eye_w = jnp.eye(W, dtype=jnp.float32)
    bands = []
    for kh in range(KH):
        rows = jnp.zeros(((W + KW - 1) * Cin, W * Cout), jnp.float32)
        for kw in range(KW):
            band = jnp.kron(eye_w, conv_w[kh, kw].astype(jnp.float32))   # (W*Cin, W*Cout)
            rows = rows + jnp.pad(band, ((kw * Cin, (KW - 1 - kw) * Cin), (0, 0)))
        bands.append(rows)
    wmat = jnp.concatenate(bands, axis=0)                                 # (Kc, W*Cout)
    wmat = jnp.pad(wmat, ((0, Kpad - Kc), (0, 0))).astype(jnp.bfloat16)   # (Kpad, W*Cout)

    bpack = jnp.tile(conv_b.astype(jnp.float32), W).reshape(1, W * Cout)

    sel = jnp.tile(jnp.eye(Cout, dtype=jnp.float32), (W, 1))              # (W*Cout, Cout)
    wpl = sel @ lin_w.T.astype(jnp.float32)                               # (W*Cout, classes)
    wpl = jnp.pad(wpl, ((0, 0), (0, Cpad - num_classes))).astype(jnp.bfloat16)
    lb = jnp.pad(lin_b.astype(jnp.float32), (0, Cpad - num_classes)).reshape(1, Cpad)
    return wmat, bpack, wpl, lb


# ---------------------------------------------------------------------------
# ClassifierModule forward
# ---------------------------------------------------------------------------
@functools.partial(jax.jit, static_argnames=("num_classes", "images_per_step"))
def classifier_module_forward(x_last_nchw, wmat, bpack, wpl, lb, *,
                              num_classes, images_per_step=8):
    """Returns (logits (N, num_classes), f (N, C, H, W)) matching the PyTorch module."""
    N, Cin, H, W = x_last_nchw.shape
    Kpad, WCout = wmat.shape
    Cout = WCout // W
    Cpad = wpl.shape[1]
    Kc = _KH * (W + _KW - 1) * Cin

    # --- host-side input repack: NCHW -> kh-folded, lane-padded im2col rows (bf16) ------
    x_nhwc = jnp.transpose(x_last_nchw, (0, 2, 3, 1))
    xp = jnp.pad(x_nhwc, ((0, 0), (1, 1), (1, 1), (0, 0)))                # pad=1 halo
    xp = xp.reshape(N, H + 2, (W + 2) * Cin)
    xrows = jnp.concatenate([xp[:, kh:kh + H, :] for kh in range(_KH)], axis=-1)  # (N,H,Kc)
    xrows = jnp.pad(xrows, ((0, 0), (0, 0), (0, Kpad - Kc))).astype(jnp.bfloat16)

    # --- grid: Nb images per step; a single step covers the whole batch for small N -----
    Nb = min(N, images_per_step)
    steps = -(-N // Nb)
    Np = steps * Nb
    if Np != N:
        xrows = jnp.pad(xrows, ((0, Np - N), (0, 0), (0, 0)))

    kernel = functools.partial(_msnet_classifier_kernel, inv_hw=1.0 / float(H * W))

    # Constant-operand blocks (wmat/bpack/wpl/lb) are revisited every step; with the usual
    # single-step grid there is no double-buffering cost, so no pipeline_mode override.
    f_packed, logits3 = pl.pallas_call(
        kernel,
        out_shape=(
            jax.ShapeDtypeStruct((Np, H, WCout), jnp.bfloat16),           # f, lane-dense
            jax.ShapeDtypeStruct((Np, 1, Cpad), jnp.float32),             # logits, padded
        ),
        grid=(steps,),
        in_specs=[
            pl.BlockSpec((Nb, H, Kpad), lambda i: (i, 0, 0)),
            pl.BlockSpec((Kpad, WCout), lambda i: (0, 0)),
            pl.BlockSpec((1, WCout), lambda i: (0, 0)),
            pl.BlockSpec((WCout, Cpad), lambda i: (0, 0)),
            pl.BlockSpec((1, Cpad), lambda i: (0, 0)),
        ],
        out_specs=(
            pl.BlockSpec((Nb, H, WCout), lambda i: (i, 0, 0)),
            pl.BlockSpec((Nb, 1, Cpad), lambda i: (i, 0, 0)),
        ),
        compiler_params=pltpu.CompilerParams(
            dimension_semantics=(("parallel",) if steps > 1 else ("arbitrary",))),
    )(xrows, wmat, bpack, wpl, lb)

    logits = logits3[:N, 0, :num_classes]
    # f back to NCHW/f32 to match the PyTorch return convention. At production sizes return
    # the lane-packed bf16 NHWC f_packed instead and skip this HBM relayout.
    f_nchw = jnp.transpose(f_packed[:N].reshape(N, H, W, Cout),
                           (0, 3, 1, 2)).astype(jnp.float32)
    return logits, f_nchw


# ---------------------------------------------------------------------------
# Pure-JAX reference for a numerical sanity check.
# ---------------------------------------------------------------------------
def _reference_forward(x_nchw, conv_w, conv_b, lin_w, lin_b):
    f = jax.lax.conv_general_dilated(
        x_nchw, conv_w, window_strides=(1, 1), padding="SAME",
        dimension_numbers=("NCHW", "HWIO", "NCHW"))
    f = jnp.maximum(f + conv_b[None, :, None, None], 0.0)
    pooled = jnp.mean(f, axis=(2, 3))
    return pooled @ lin_w.T + lin_b, f


if __name__ == "__main__":
    # Small shapes consistent with the module: x[-1] is NCHW.
    N, Cin, H, W = 2, 4, 16, 16
    channel = 8          # output channels of self.m == input features of linear
    num_classes = 10

    key = jax.random.PRNGKey(0)
    k_x, k_cw, k_cb, k_lw, k_lb = jax.random.split(key, 5)

    # Forward takes a list of feature maps; only the last one is used.
    x_list = [
        jnp.zeros((N, Cin, H, W), jnp.float32),                  # unused entries
        jax.random.normal(k_x, (N, Cin, H, W), jnp.float32),     # x[-1]
    ]

    # Deterministic parameter init (synthetic, not a checkpoint).
    conv_w = 0.1 * jax.random.normal(k_cw, (3, 3, Cin, channel), jnp.float32)   # HWIO
    conv_b = 0.1 * jax.random.normal(k_cb, (channel,), jnp.float32)
    lin_w = 0.1 * jax.random.normal(k_lw, (num_classes, channel), jnp.float32)  # PyTorch (out, in)
    lin_b = 0.1 * jax.random.normal(k_lb, (num_classes,), jnp.float32)

    # Pack weights ONCE (per weight update), outside the per-forward jit.
    wmat, bpack, wpl, lb = pack_classifier_params(conv_w, conv_b, lin_w, lin_b, W)

    logits, f = classifier_module_forward(x_list[-1], wmat, bpack, wpl, lb,
                                          num_classes=num_classes)
    jax.block_until_ready((logits, f))

    assert logits.shape == (N, num_classes)
    assert f.shape == (N, channel, H, W)

    # Sanity check against the pure-JAX reference (bf16 MXU operands / bf16 f -> loose tol).
    logits_exp, f_exp = _reference_forward(x_list[-1], conv_w, conv_b, lin_w, lin_b)
    assert float(jnp.max(jnp.abs(f - f_exp))) < 5e-2
    assert float(jnp.max(jnp.abs(logits - logits_exp))) < 5e-2

    print("KERNEL_OK")
</pallas_src>

<mosaic_0001>
module attributes {stable_mosaic.version = 11 : i64} {
  func.func @_msnet_classifier_kernel(%arg0: i32, %arg1: memref<2x16x256xbf16, #tpu.memory_space<vmem>>, %arg2: memref<256x128xbf16, #tpu.memory_space<vmem>>, %arg3: memref<1x128xf32, #tpu.memory_space<vmem>>, %arg4: memref<128x128xbf16, #tpu.memory_space<vmem>>, %arg5: memref<1x128xf32, #tpu.memory_space<vmem>>, %arg6: memref<2x16x128xbf16, #tpu.memory_space<vmem>>, %arg7: memref<2x1x128xf32, #tpu.memory_space<vmem>>) attributes {dimension_semantics = [#tpu.dimension_semantics<arbitrary>], iteration_bounds = array<i64: 1>, scalar_prefetch = 0 : i64, scratch_operands = 0 : i64, tpu.core_type = #tpu.core_type<tc>, window_params = [{transform_indices = @transform_0, window_bounds = array<i64: 2, 16, 256>}, {pipeline_mode = #tpu.pipeline_mode<synchronous>, transform_indices = @transform_1, window_bounds = array<i64: 256, 128>}, {pipeline_mode = #tpu.pipeline_mode<synchronous>, transform_indices = @transform_2, window_bounds = array<i64: 1, 128>}, {pipeline_mode = #tpu.pipeline_mode<synchronous>, transform_indices = @transform_3, window_bounds = array<i64: 128, 128>}, {pipeline_mode = #tpu.pipeline_mode<synchronous>, transform_indices = @transform_4, window_bounds = array<i64: 1, 128>}, {transform_indices = @transform_5, window_bounds = array<i64: 2, 16, 128>}, {transform_indices = @transform_6, window_bounds = array<i64: 2, 1, 128>}]} {
    %c0 = arith.constant 0 : index
    %c0_0 = arith.constant 0 : index
    %c0_1 = arith.constant 0 : index
    %0 = vector.load %arg1[%c0, %c0_0, %c0_1] : memref<2x16x256xbf16, #tpu.memory_space<vmem>>, vector<2x16x256xbf16>
    %1 = vector.shape_cast %0 : vector<2x16x256xbf16> to vector<32x256xbf16>
    %c0_2 = arith.constant 0 : index
    %c0_3 = arith.constant 0 : index
    %2 = vector.load %arg2[%c0_2, %c0_3] : memref<256x128xbf16, #tpu.memory_space<vmem>>, vector<256x128xbf16>
    %cst = arith.constant dense<0.000000e+00> : vector<32x128xf32>
    %3 = tpu.matmul %1, %2, %cst {dimension_numbers = #tpu.dot_dimension_numbers<[1], [0], [0], [1], [0, 0, 1, 1], [], []>} : vector<32x256xbf16>, vector<256x128xbf16>, vector<32x128xf32> -> vector<32x128xf32>
    %c0_4 = arith.constant 0 : index
    %c0_5 = arith.constant 0 : index
    %4 = vector.load %arg3[%c0_4, %c0_5] : memref<1x128xf32, #tpu.memory_space<vmem>>, vector<1x128xf32>
    %5 = vector.broadcast %4 : vector<1x128xf32> to vector<32x128xf32>
    %6 = arith.addf %3, %5 : vector<32x128xf32>
    %cst_6 = arith.constant 0.000000e+00 : f32
    %7 = vector.broadcast %cst_6 : f32 to vector<32x128xf32>
    %8 = arith.maximumf %6, %7 : vector<32x128xf32>
    %9 = vector.shape_cast %8 : vector<32x128xf32> to vector<2x16x128xf32>
    %10 = arith.truncf %9 : vector<2x16x128xf32> to vector<2x16x128xbf16>
    %c0_7 = arith.constant 0 : index
    %c0_8 = arith.constant 0 : index
    %c0_9 = arith.constant 0 : index
    %11 = vector.load %arg6[%c0_7, %c0_8, %c0_9] : memref<2x16x128xbf16, #tpu.memory_space<vmem>>, vector<2x16x128xbf16>
    tpu.vector_store %arg6[%c0_7, %c0_8, %c0_9], %10 {strides = array<i32>} : memref<2x16x128xbf16, #tpu.memory_space<vmem>>, vector<2x16x128xbf16>,
    %cst_10 = arith.constant dense<0.000000e+00> : vector<2x128xf32>
    %12 = vector.multi_reduction <add>, %9, %cst_10 [1] : vector<2x16x128xf32> to vector<2x128xf32>
    %cst_11 = arith.constant 3.906250e-03 : f32
    %13 = vector.broadcast %cst_11 : f32 to vector<2x128xf32>
    %14 = arith.mulf %12, %13 : vector<2x128xf32>
    %15 = arith.truncf %14 : vector<2x128xf32> to vector<2x128xbf16>
    %c0_12 = arith.constant 0 : index
    %c0_13 = arith.constant 0 : index
    %16 = vector.load %arg4[%c0_12, %c0_13] : memref<128x128xbf16, #tpu.memory_space<vmem>>, vector<128x128xbf16>
    %cst_14 = arith.constant dense<0.000000e+00> : vector<2x128xf32>
    %17 = tpu.matmul %15, %16, %cst_14 {dimension_numbers = #tpu.dot_dimension_numbers<[1], [0], [0], [1], [0, 0, 1, 1], [], []>} : vector<2x128xbf16>, vector<128x128xbf16>, vector<2x128xf32> -> vector<2x128xf32>
    %c0_15 = arith.constant 0 : index
    %c0_16 = arith.constant 0 : index
    %18 = vector.load %arg5[%c0_15, %c0_16] : memref<1x128xf32, #tpu.memory_space<vmem>>, vector<1x128xf32>
    %19 = vector.broadcast %18 : vector<1x128xf32> to vector<2x128xf32>
    %20 = arith.addf %17, %19 : vector<2x128xf32>
    %21 = vector.shape_cast %20 : vector<2x128xf32> to vector<2x1x128xf32>
    %c0_17 = arith.constant 0 : index
    %c0_18 = arith.constant 0 : index
    %c0_19 = arith.constant 0 : index
    %22 = vector.load %arg7[%c0_17, %c0_18, %c0_19] : memref<2x1x128xf32, #tpu.memory_space<vmem>>, vector<2x1x128xf32>
    tpu.vector_store %arg7[%c0_17, %c0_18, %c0_19], %21 {strides = array<i32>} : memref<2x1x128xf32, #tpu.memory_space<vmem>>, vector<2x1x128xf32>,
    return
  }
  func.func @transform_0(%arg0: i32) -> (i32, i32, i32) {
    %c0_i32 = arith.constant 0 : i32
    %c0_i32_0 = arith.constant 0 : i32
    %c0_i32_1 = arith.constant 0 : i32
    return %arg0, %c0_i32, %c0_i32_0 : i32, i32, i32
  }
  func.func @transform_1(%arg0: i32) -> (i32, i32) {
    %c0_i32 = arith.constant 0 : i32
    %c0_i32_0 = arith.constant 0 : i32
    %c0_i32_1 = arith.constant 0 : i32
    return %c0_i32, %c0_i32_0 : i32, i32
  }
  func.func @transform_2(%arg0: i32) -> (i32, i32) {
    %c0_i32 = arith.constant 0 : i32
    %c0_i32_0 = arith.constant 0 : i32
    %c0_i32_1 = arith.constant 0 : i32
    return %c0_i32, %c0_i32_0 : i32, i32
  }
  func.func @transform_3(%arg0: i32) -> (i32, i32) {
    %c0_i32 = arith.constant 0 : i32
    %c0_i32_0 = arith.constant 0 : i32
    %c0_i32_1 = arith.constant 0 : i32
    return %c0_i32, %c0_i32_0 : i32, i32
  }
  func.func @transform_4(%arg0: i32) -> (i32, i32) {
    %c0_i32 = arith.constant 0 : i32
    %c0_i32_0 = arith.constant 0 : i32
    %c0_i32_1 = arith.constant 0 : i32
    return %c0_i32, %c0_i32_0 : i32, i32
  }
  func.func @transform_5(%arg0: i32) -> (i32, i32, i32) {
    %c0_i32 = arith.constant 0 : i32
    %c0_i32_0 = arith.constant 0 : i32
    %c0_i32_1 = arith.constant 0 : i32
    return %arg0, %c0_i32, %c0_i32_0 : i32, i32, i32
  }
  func.func @transform_6(%arg0: i32) -> (i32, i32, i32) {
    %c0_i32 = arith.constant 0 : i32
    %c0_i32_0 = arith.constant 0 : i32
    %c0_i32_1 = arith.constant 0 : i32
    return %arg0, %c0_i32, %c0_i32_0 : i32, i32, i32
  }
}

</mosaic_0001>

<llo_original>
// kernel: classifier_module_forward.1
$region0: #{classifier_module_forward.1}
  #allocation0 [shape = 'u32[]', space=smem, size = 0x4, offset = 0x4, fixed_abs, tag = 'smem constant byte address 0x4 - core index']
  #allocation1 [shape = 'u32[144,128]{1,0:T(1,128)}', space=vmem, size = 0x12000, scoped, tag = 'internal scratch']
  %s0 = inlined_call_operand.vmem [shape: bf16[2,16,256], index: 0, kind: input, shape index: {}]
  %s1 = inlined_call_operand.vmem [shape: bf16[256,128], index: 1, kind: input, shape index: {}]
  %s2 = inlined_call_operand.vmem [shape: f32[1,128], index: 2, kind: input, shape index: {}]
  %s3 = inlined_call_operand.vmem [shape: bf16[128,128], index: 3, kind: input, shape index: {}]
  %s4 = inlined_call_operand.vmem [shape: f32[1,128], index: 4, kind: input, shape index: {}]
  %s5 = inlined_call_operand.vmem [shape: bf16[2,16,128], index: 5, kind: output, shape index: {0}]
  %s6 = inlined_call_operand.hbm [shape: f32[2,1,128], index: 6, kind: output, shape index: {1}]
  %7 = xla_tuple %s5, %s6
  %s8 = sld [smem:[#allocation0]]
  $region38: #{classifier_module_forward.1} parent=0
    _
  %s10 = ssub.s32 1, %s8
  %s11 = scalar_select 0, %s10, %s8
  $region1: #{classifier_module_forward.1} parent=0
    #allocation2 [shape = 'u8[1024]{0}', space=vmem, size = 0x400, scoped, tag = 'output window, operand 1, single buffered']
    #allocation3 [shape = 's32[1]{0}', space=sflag, size = 0x4, scoped, tag = 'scoped memory for classifier_module_forward.1']
    %12 = vsyncpa [#allocation3], 0
    // Predicated region
    $region2: #{classifier_module_forward.1} parent=1 // pred_check
      _
    $region3: #{classifier_module_forward.1} parent=1 // pred_check_branch
      %14 = sbr.rel (0) target = $region5
    $region4: #{classifier_module_forward.1} parent=1 // pred_region
      _
    $region5: #{classifier_module_forward.1} parent=1 // pred_fallthru
      _
    // Predicated region
    $region6: #{classifier_module_forward.1} parent=1 // pred_check
      _
    $region7: #{classifier_module_forward.1} parent=1 // pred_check_branch
      %16 = sbr.rel (0) target = $region9
    $region8: #{classifier_module_forward.1} parent=1 // pred_region
      _
    $region9: #{classifier_module_forward.1} parent=1 // pred_fallthru
      _
    // Predicated region
    $region10: #{classifier_module_forward.1} parent=1 // pred_check
      _
    $region11: #{classifier_module_forward.1} parent=1 // pred_check_branch
      %18 = sbr.rel (0) target = $region13
    $region12: #{classifier_module_forward.1} parent=1 // pred_region
      _
    $region13: #{classifier_module_forward.1} parent=1 // pred_fallthru
      _
    // Predicated region
    $region14: #{classifier_module_forward.1} parent=1 // pred_check
      _
    $region15: #{classifier_module_forward.1} parent=1 // pred_check_branch
      %20 = sbr.rel (0) target = $region17
    $region16: #{classifier_module_forward.1} parent=1 // pred_region
      _
    $region17: #{classifier_module_forward.1} parent=1 // pred_fallthru
      _
    // Predicated region
    $region18: #{classifier_module_forward.1} parent=1 // pred_check
      _
    $region19: #{classifier_module_forward.1} parent=1 // pred_check_branch
      %22 = sbr.rel (0) target = $region21
    $region20: #{classifier_module_forward.1} parent=1 // pred_region
      _
    $region21: #{classifier_module_forward.1} parent=1 // pred_fallthru
      _
    %v24 = vld [vmem:[%s0] sm:$0xff]
    %v25 = vld [vmem:[%s0 + $0x8] sm:$0xff]
    %v26 = vld [vmem:[%s0 + $0x10] sm:$0xff]
    %v27 = vld [vmem:[%s0 + $0x18] sm:$0xff]
    %v28 = vld [vmem:[%s1] sm:$0xf]
    %v29 = vld [vmem:[%s1 + $0x4] sm:$0xf]
    %v30 = vld [vmem:[%s1 + $0x8] sm:$0xf]
    %v31 = vld [vmem:[%s1 + $0xc] sm:$0xf]
    %v32 = vld [vmem:[%s1 + $0x10] sm:$0xf]
    %v33 = vld [vmem:[%s1 + $0x14] sm:$0xf]
    %v34 = vld [vmem:[%s1 + $0x18] sm:$0xf]
    %v35 = vld [vmem:[%s1 + $0x1c] sm:$0xf]
    %v36 = vld [vmem:[%s1 + $0x20] sm:$0xf]
    %v37 = vld [vmem:[%s1 + $0x24] sm:$0xf]
    %v38 = vld [vmem:[%s1 + $0x28] sm:$0xf]
    %v39 = vld [vmem:[%s1 + $0x2c] sm:$0xf]
    %v40 = vld [vmem:[%s1 + $0x30] sm:$0xf]
    %v41 = vld [vmem:[%s1 + $0x34] sm:$0xf]
    %v42 = vld [vmem:[%s1 + $0x38] sm:$0xf]
    %v43 = vld [vmem:[%s1 + $0x3c] sm:$0xf]
    %v44 = vld [vmem:[%s1 + $0x40] sm:$0xf]
    %v45 = vld [vmem:[%s1 + $0x44] sm:$0xf]
    %v46 = vld [vmem:[%s1 + $0x48] sm:$0xf]
    %v47 = vld [vmem:[%s1 + $0x4c] sm:$0xf]
    %v48 = vld [vmem:[%s1 + $0x50] sm:$0xf]
    %v49 = vld [vmem:[%s1 + $0x54] sm:$0xf]
    %v50 = vld [vmem:[%s1 + $0x58] sm:$0xf]
    %v51 = vld [vmem:[%s1 + $0x5c] sm:$0xf]
    %v52 = vld [vmem:[%s1 + $0x60] sm:$0xf]
    %v53 = vld [vmem:[%s1 + $0x64] sm:$0xf]
    %v54 = vld [vmem:[%s1 + $0x68] sm:$0xf]
    %v55 = vld [vmem:[%s1 + $0x6c] sm:$0xf]
    %v56 = vld [vmem:[%s1 + $0x70] sm:$0xf]
    %v57 = vld [vmem:[%s1 + $0x74] sm:$0xf]
    %v58 = vld [vmem:[%s1 + $0x78] sm:$0xf]
    %v59 = vld [vmem:[%s1 + $0x7c] sm:$0xf]
    %v60 = vld [vmem:[%s2] sm:$0x1]
    %v62 = vlaneseq
    %v63 = vshrl.u32 %v62, 7
    %v64 = vsub.s32 0, %v63
    %v65 = vrot.slane %v60, %v64
    %v71 = vunpack.c.l.b16 %v24
    %v72 = vunpack.c.h.b16 %v24
    %v73 = vunpack.c.l.b16 %v25
    %v74 = vunpack.c.h.b16 %v25
    %v75 = vunpack.c.l.b16 %v26
    %v76 = vunpack.c.h.b16 %v26
    %v77 = vunpack.c.l.b16 %v27
    %v78 = vunpack.c.h.b16 %v27
    %v79 = vpack.c.b16 %v73, %v71
    %v80 = vpack.c.b16 %v74, %v72
    %v81 = vpack.c.b16 %v77, %v75
    %v82 = vpack.c.b16 %v78, %v76
    %v119 = vunpack.c.l.b16 %v28
    %v120 = vunpack.c.l.b16 %v29
    %v121 = vunpack.c.l.b16 %v30
    %v122 = vunpack.c.l.b16 %v31
    %v123 = vunpack.c.l.b16 %v32
    %v124 = vunpack.c.l.b16 %v33
    %v125 = vunpack.c.l.b16 %v34
    %v126 = vunpack.c.l.b16 %v35
    %v127 = vunpack.c.l.b16 %v36
    %v128 = vunpack.c.l.b16 %v37
    %v129 = vunpack.c.l.b16 %v38
    %v130 = vunpack.c.l.b16 %v39
    %v131 = vunpack.c.l.b16 %v40
    %v132 = vunpack.c.l.b16 %v41
    %v133 = vunpack.c.l.b16 %v42
    %v134 = vunpack.c.l.b16 %v43
    %v135 = vunpack.c.l.b16 %v44
    %v136 = vunpack.c.l.b16 %v45
    %v137 = vunpack.c.l.b16 %v46
    %v138 = vunpack.c.l.b16 %v47
    %v139 = vunpack.c.l.b16 %v48
    %v140 = vunpack.c.l.b16 %v49
    %v141 = vunpack.c.l.b16 %v50
    %v142 = vunpack.c.l.b16 %v51
    %v143 = vunpack.c.l.b16 %v52
    %v144 = vunpack.c.l.b16 %v53
    %v145 = vunpack.c.l.b16 %v54
    %v146 = vunpack.c.l.b16 %v55
    %v147 = vunpack.c.l.b16 %v56
    %v148 = vunpack.c.l.b16 %v57
    %v149 = vunpack.c.l.b16 %v58
    %v150 = vunpack.c.l.b16 %v59
    %v151 = vpack.c.b16 %v120, %v119
    %v152 = vpack.c.b16 %v122, %v121
    %v153 = vpack.c.b16 %v124, %v123
    %v154 = vpack.c.b16 %v126, %v125
    %v155 = vpack.c.b16 %v128, %v127
    %v156 = vpack.c.b16 %v130, %v129
    %v157 = vpack.c.b16 %v132, %v131
    %v158 = vpack.c.b16 %v134, %v133
    %v159 = vpack.c.b16 %v136, %v135
    %v160 = vpack.c.b16 %v138, %v137
    %v161 = vpack.c.b16 %v140, %v139
    %v162 = vpack.c.b16 %v142, %v141
    %v163 = vpack.c.b16 %v144, %v143
    %v164 = vpack.c.b16 %v146, %v145
    %v165 = vpack.c.b16 %v148, %v147
    %v166 = vpack.c.b16 %v150, %v149
    %183 = vmatprep.subr.bf16.mxu0 0
    %184 = vmatpush1.bf16.msra.mxu0 %v158
    %185 = vmatprep.subr.bf16.mxu0 0
    %186 = vmatpush1.bf16.msra.mxu0 %v157
    %187 = vmatprep.subr.bf16.mxu0 0
    %188 = vmatpush1.bf16.msra.mxu0 %v156
    %189 = vmatprep.subr.bf16.mxu0 0
    %190 = vmatpush1.bf16.msra.mxu0 %v155
    %191 = vmatprep.subr.bf16.mxu0 0
    %192 = vmatpush1.bf16.msra.mxu0 %v154
    %193 = vmatprep.subr.bf16.mxu0 0
    %194 = vmatpush1.bf16.msra.mxu0 %v153
    %195 = vmatprep.subr.bf16.mxu0 0
    %196 = vmatpush1.bf16.msra.mxu0 %v152
    %197 = vmatprep.subr.bf16.mxu0 0
    %198 = vmatpush1.bf16.msra.mxu0 %v151
    %199 = vmatprep.subr.bf16.mxu0 0
    %200 = vmatpush2.bf16.msra.mxu0 %v166
    %201 = vmatprep.subr.bf16.mxu0 0
    %202 = vmatpush2.bf16.msra.mxu0 %v165
    %203 = vmatprep.subr.bf16.mxu0 0
    %204 = vmatpush2.bf16.msra.mxu0 %v164
    %205 = vmatprep.subr.bf16.mxu0 0
    %206 = vmatpush2.bf16.msra.mxu0 %v163
    %207 = vmatprep.subr.bf16.mxu0 0
    %208 = vmatpush2.bf16.msra.mxu0 %v162
    %209 = vmatprep.subr.bf16.mxu0 0
    %210 = vmatpush2.bf16.msra.mxu0 %v161
    %211 = vmatprep.subr.bf16.mxu0 0
    %212 = vmatpush2.bf16.msra.mxu0 %v160
    %213 = vmatprep.subr.bf16.mxu0 0
    %214 = vmatpush2.bf16.msra.mxu0 %v159
    %215 = vmatprep.mubr.bf16.mxu0 %v80
    %216 = vmatmul.mubr.bf16.gmra.mxu0 %v79
    %v217 = vpop.f32.mrf.mxu0
    %v218 = vadd.f32 %v65, %v217
    %v219 = vpop.f32.mrf.mxu0
    %v220 = vpop.f32.mrf.mxu0
    %v221 = vadd.f32 %v65, %v220
    %v222 = vpop.f32.mrf.mxu0
    %223 = vmatprep.mubr.bf16.mxu0 %v82
    %224 = vmatmul.mubr.bf16.gmra.mxu0 %v81
    %v225 = vpop.f32.mrf.mxu0
    %v226 = vadd.f32 %v65, %v225
    %v227 = vpop.f32.mrf.mxu0
    %v228 = vpop.f32.mrf.mxu0
    %v229 = vadd.f32 %v65, %v228
    %v230 = vpop.f32.mrf.mxu0
    %231 = vdwg.mxu0
    %v232 = vmax.f32 %v218, 0.0
    %v233 = vmax.f32 %v221, 0.0
    %v234 = vmax.f32 %v226, 0.0
    %v235 = vmax.f32 %v229, 0.0
    %v236 = vpack.c.bf16 %v233, %v232
    %v237 = vpack.c.bf16 %v235, %v234
    %v240 = vunpack.c.l.b16 %v236
    %v241 = vunpack.c.h.b16 %v236
    %v242 = vunpack.c.l.b16 %v237
    %v243 = vunpack.c.h.b16 %v237
    %v244 = vpack.c.b16 %v240, %v240
    %v245 = vpack.c.b16 %v241, %v241
    %v246 = vpack.c.b16 %v242, %v242
    %v247 = vpack.c.b16 %v243, %v243
    %252 = vst [vmem:[%s5] sm:$0xf] %v244
    %253 = vst [vmem:[%s5 + $0x4] sm:$0xf] %v245
    %254 = vst [vmem:[%s5 + $0x8] sm:$0xf] %v246
    %255 = vst [vmem:[%s5 + $0xc] sm:$0xf] %v247
    %v256 = vadd.f32 %v232, %v233
    %v257 = vrot.slane %v256, 4
    %v258 = vadd.f32 %v256, %v257
    %v259 = vrot.slane %v258, 2
    %v260 = vadd.f32 %v258, %v259
    %v261 = vrot.slane %v260, 1
    %v262 = vadd.f32 %v260, %v261
    %v263 = vadd.f32 %v234, %v235
    %v264 = vrot.slane %v263, 4
    %v265 = vadd.f32 %v263, %v264
    %v266 = vrot.slane %v265, 2
    %v267 = vadd.f32 %v265, %v266
    %v268 = vrot.slane %v267, 1
    %v269 = vadd.f32 %v267, %v268
    %v270 = vmul.f32 %v262, 0.00390625
    %v271 = vmul.f32 %v269, 0.00390625
    %v272 = vpack.c.bf16 %v270, %v270
    %v273 = vpack.c.bf16 %v271, %v271
    %v274 = vld [vmem:[%s3] sm:$0xf]
    %v275 = vld [vmem:[%s3 + $0x4] sm:$0xf]
    %v276 = vld [vmem:[%s3 + $0x8] sm:$0xf]
    %v277 = vld [vmem:[%s3 + $0xc] sm:$0xf]
    %v278 = vld [vmem:[%s3 + $0x10] sm:$0xf]
    %v279 = vld [vmem:[%s3 + $0x14] sm:$0xf]
    %v280 = vld [vmem:[%s3 + $0x18] sm:$0xf]
    %v281 = vld [vmem:[%s3 + $0x1c] sm:$0xf]
    %v282 = vld [vmem:[%s3 + $0x20] sm:$0xf]
    %v283 = vld [vmem:[%s3 + $0x24] sm:$0xf]
    %v284 = vld [vmem:[%s3 + $0x28] sm:$0xf]
    %v285 = vld [vmem:[%s3 + $0x2c] sm:$0xf]
    %v286 = vld [vmem:[%s3 + $0x30] sm:$0xf]
    %v287 = vld [vmem:[%s3 + $0x34] sm:$0xf]
    %v288 = vld [vmem:[%s3 + $0x38] sm:$0xf]
    %v289 = vld [vmem:[%s3 + $0x3c] sm:$0xf]
    %v290 = vld [vmem:[%s4] sm:$0x1]
    %v292 = vlaneseq
    %v293 = vshrl.u32 %v292, 7
    %v294 = vsub.s32 0, %v293
    %v295 = vrot.slane %v290, %v294
    %v299 = vunpack.c.l.b16 %v272
    %v300 = vunpack.c.l.b16 %v273
    %vm301 = vcmask 1041409
    %v302 = vsel %vm301, %v300, %v299
    %v303 = vpack.c.b16 %v302, %v302
    %v321 = vunpack.c.l.b16 %v274
    %v322 = vunpack.c.l.b16 %v275
    %v323 = vunpack.c.l.b16 %v276
    %v324 = vunpack.c.l.b16 %v277
    %v325 = vunpack.c.l.b16 %v278
    %v326 = vunpack.c.l.b16 %v279
    %v327 = vunpack.c.l.b16 %v280
    %v328 = vunpack.c.l.b16 %v281
    %v329 = vunpack.c.l.b16 %v282
    %v330 = vunpack.c.l.b16 %v283
    %v331 = vunpack.c.l.b16 %v284
    %v332 = vunpack.c.l.b16 %v285
    %v333 = vunpack.c.l.b16 %v286
    %v334 = vunpack.c.l.b16 %v287
    %v335 = vunpack.c.l.b16 %v288
    %v336 = vunpack.c.l.b16 %v289
    %v337 = vpack.c.b16 %v322, %v321
    %v338 = vpack.c.b16 %v324, %v323
    %v339 = vpack.c.b16 %v326, %v325
    %v340 = vpack.c.b16 %v328, %v327
    %v341 = vpack.c.b16 %v330, %v329
    %v342 = vpack.c.b16 %v332, %v331
    %v343 = vpack.c.b16 %v334, %v333
    %v344 = vpack.c.b16 %v336, %v335
    %353 = vmatprep.subr.bf16.mxu0 0
    %354 = vmatpush1.bf16.msra.mxu0 %v344
    %355 = vmatprep.subr.bf16.mxu0 0
    %356 = vmatpush1.bf16.msra.mxu0 %v343
    %357 = vmatprep.subr.bf16.mxu0 0
    %358 = vmatpush1.bf16.msra.mxu0 %v342
    %359 = vmatprep.subr.bf16.mxu0 0
    %360 = vmatpush1.bf16.msra.mxu0 %v341
    %361 = vmatprep.subr.bf16.mxu0 0
    %362 = vmatpush1.bf16.msra.mxu0 %v340
    %363 = vmatprep.subr.bf16.mxu0 0
    %364 = vmatpush1.bf16.msra.mxu0 %v339
    %365 = vmatprep.subr.bf16.mxu0 0
    %366 = vmatpush1.bf16.msra.mxu0 %v338
    %367 = vmatprep.subr.bf16.mxu0 0
    %368 = vmatpush1.bf16.msra.mxu0 %v337
    %369 = vmatprep.subr.bf16.mxu0 0
    %370 = vmatpush2.bf16.msra.mxu0 0
    %371 = vmatprep.subr.bf16.mxu0 0
    %372 = vmatpush2.bf16.msra.mxu0 0
    %373 = vmatprep.subr.bf16.mxu0 0
    %374 = vmatpush2.bf16.msra.mxu0 0
    %375 = vmatprep.subr.bf16.mxu0 0
    %376 = vmatpush2.bf16.msra.mxu0 0
    %377 = vmatprep.subr.bf16.mxu0 0
    %378 = vmatpush2.bf16.msra.mxu0 0
    %379 = vmatprep.subr.bf16.mxu0 0
    %380 = vmatpush2.bf16.msra.mxu0 0
    %381 = vmatprep.subr.bf16.mxu0 0
    %382 = vmatpush2.bf16.msra.mxu0 0
    %383 = vmatprep.subr.bf16.mxu0 0
    %384 = vmatpush2.bf16.msra.mxu0 0
    %385 = vmatprep.mubr.bf16.mxu0 0
    %386 = vmatmul.mubr.bf16.gmra.mxu0 %v303
    %v387 = vpop.f32.mrf.mxu0
    %v388 = vadd.f32 %v295, %v387
    %v389 = vpop.f32.mrf.mxu0
    %v390 = vpop.f32.mrf.mxu0
    %v391 = vpop.f32.mrf.mxu0
    %392 = vdwg.mxu0
    %v395 = vunpack.c.l.s4 1966171168
    %v396 = vunpack.c.0.s8 %v395
    %v397 = vlaneseq
    %v398 = vshrl.u32 %v397, 7
    %v399 = vsub.s32 %v396, %v398
    %v400 = vrot.slane %v388, %v399
    %v401 = vcombine.high %v400, %v400
    %v403 = vunpack.c.l.s4 1966171168
    %v404 = vunpack.c.0.s8 %v403
    %v405 = vlaneseq
    %v406 = vshrl.u32 %v405, 7
    %v407 = vsub.s32 %v404, %v406
    %v408 = vrot.slane %v400, %v407
    %v410 = vunpack.c.l.s4 1966171168
    %v411 = vunpack.c.0.s8 %v410
    %v412 = vlaneseq
    %v413 = vshrl.u32 %v412, 7
    %v414 = vsub.s32 %v411, %v413
    %v415 = vrot.slane %v401, %v414
    %418 = vst [vmem:[#allocation2] sm:$0x1] %v408
    %419 = vst [vmem:[#allocation2 + $0x1] sm:$0x1] %v415
    // Predicated region
    $region22: #{classifier_module_forward.1} parent=1 // pred_check
      _
    $region23: #{classifier_module_forward.1} parent=1 // pred_check_branch
      %421 = sbr.rel (0) target = $region25
    $region24: #{classifier_module_forward.1} parent=1 // pred_region
      _
    $region25: #{classifier_module_forward.1} parent=1 // pred_fallthru
      _
    // Predicated region
    $region26: #{classifier_module_forward.1} parent=1 // pred_check
      _
    $region27: #{classifier_module_forward.1} parent=1 // pred_check_branch
      %423 = sbr.rel (0) target = $region29
    $region28: #{classifier_module_forward.1} parent=1 // pred_region
      %s425 = ssub.s32 32, 32
      %426 = vsyncadd [#allocation3], %s425
      %s427 = sshll.u32 [#allocation2], 4
      %s428 = int_to_ptr.vmem [resolvable:$true] %s427
      %433 = dma.vmem_to_hbm [thread:$0]  %s428, 32, %s6, [#allocation3], 16, 16, 1
    $region29: #{classifier_module_forward.1} parent=1 // pred_fallthru
      _
    // Predicated region
    $region30: #{classifier_module_forward.1} parent=1 // pred_check
      _
    $region31: #{classifier_module_forward.1} parent=1 // pred_check_branch
      %435 = sbr.rel (0) target = $region33
    $region32: #{classifier_module_forward.1} parent=1 // pred_region
      _
    $region33: #{classifier_module_forward.1} parent=1 // pred_fallthru
      _
    // Predicated region
    $region34: #{classifier_module_forward.1} parent=1 // pred_check
      _
    $region35: #{classifier_module_forward.1} parent=1 // pred_check_branch
      %437 = sbr.rel (0) target = $region37
    $region36: #{classifier_module_forward.1} parent=1 // pred_region
      %438 = dma.done [#allocation3], 32
    $region37: #{classifier_module_forward.1} parent=1 // pred_fallthru
      _
    %439 = vsyncpa [#allocation3], 1

</llo_original>
